<compile_context>
chip_gen: v7x
topology: tpu7x:2x2x1
jax: 0.10.0
libtpu: 0.0.40
codegen_flags: <defaults>
</compile_context>

<pallas_src>
import functools

import jax
import jax.numpy as jnp
from jax.experimental import pallas as pl
from jax.experimental.pallas import tpu as pltpu

H = 128            # hidden_size_{u,f}_net
N_LAYERS = 3       # N_LAYERS_{U,F}_NET
EPS = 1e-5         # BatchNorm1d eps
OUT_PAD = 128      # lane-dense padded output width (u in lanes 0:3, f in 0:2)
VMEM_LIMIT = 48 * 1024 * 1024   # explicit scoped-VMEM cap (safe on v5e/v6e/v7x)


def _round_up(x, m):
    return (x + m - 1) // m * m


# -----------------------------------------------------------------------------
# U_net kernel: full batch resident (training-mode BatchNorm couples all rows).
# -----------------------------------------------------------------------------
def u_net_kernel(t_ref, uw0_ref, ub0_ref, uwh_ref, ubh_ref, ug_ref, ube_ref,
                 uwo_ref, ubo_ref, u_pad_ref, *, compute_dtype):
    t = t_ref[...]                                            # (B, 1) f32
    # Linear(1,H): contraction dim is 1 -> exact broadcast on the VPU (f32).
    h = jnp.tanh(t * uw0_ref[...] + ub0_ref[...])             # (B, H) f32
    for i in range(N_LAYERS):
        z = jnp.dot(h.astype(compute_dtype), uwh_ref[i],
                    preferred_element_type=jnp.float32) + ubh_ref[i]
        # BatchNorm1d (train mode): batch mean / biased batch var; affine is
        # folded into the rsqrt scale -> single (B,H) multiply per layer.
        mu = jnp.mean(z, axis=0, keepdims=True)
        var = jnp.mean((z - mu) * (z - mu), axis=0, keepdims=True)
        scale = ug_ref[i] * jax.lax.rsqrt(var + EPS)          # (1, H)
        h = jnp.tanh((z - mu) * scale + ube_ref[i])
    # Output projection against a zero-padded (H,128) slab -> lane-dense store.
    u_pad_ref[...] = jnp.dot(h.astype(compute_dtype), uwo_ref[...],
                             preferred_element_type=jnp.float32) + ubo_ref[...]


# -----------------------------------------------------------------------------
# F_net kernel: pointwise over the batch -> batch-tiled, "parallel" grid axis.
# -----------------------------------------------------------------------------
def f_net_kernel(t_ref, u_ref, fw0t_ref, fw0u_ref, fb0_ref,
                 fwh_ref, fbh_ref, fwo_ref, fbo_ref, f_pad_ref, *,
                 compute_dtype):
    t = t_ref[...]                                            # (TB, 1) f32
    # x = cat([t, u]) @ fw0 as a split matmul: the t column is an exact f32
    # broadcast; the u columns use the zero-padded (128,H) slab so this is a
    # single full-K MXU pass on the already lane-dense u_pad block.
    g = jnp.tanh(t * fw0t_ref[...]
                 + jnp.dot(u_ref[...].astype(compute_dtype), fw0u_ref[...],
                           preferred_element_type=jnp.float32)
                 + fb0_ref[...])
    for i in range(N_LAYERS):
        g = jnp.tanh(jnp.dot(g.astype(compute_dtype), fwh_ref[i],
                             preferred_element_type=jnp.float32) + fbh_ref[i])
    f_pad_ref[...] = jnp.dot(g.astype(compute_dtype), fwo_ref[...],
                             preferred_element_type=jnp.float32) + fbo_ref[...]


# -----------------------------------------------------------------------------
# Wrapper
# -----------------------------------------------------------------------------
def _full_spec(x):
    nd = x.ndim
    return pl.BlockSpec(x.shape, lambda i, nd=nd: (0,) * nd)


def _bytes(*arrays):
    return sum(int(a.size) * a.dtype.itemsize for a in arrays)


def prepare_params(p, compute_dtype):
    """Pre-transpose is already done in init_params; here we pad the narrow
    output weights to 128 lanes, pre-split fw0 and cast MXU operands."""
    cd = compute_dtype
    q = {}
    # U_net
    q["uw0"] = p["uw0"].astype(jnp.float32)                   # (1,H) VPU path
    q["ub0"] = p["ub0"].astype(jnp.float32)
    q["uwh"] = p["uwh"].astype(cd)                            # (3,H,H) MXU path
    q["ubh"] = p["ubh"].astype(jnp.float32)
    q["ug"] = p["ug"].astype(jnp.float32)
    q["ube"] = p["ube"].astype(jnp.float32)
    q["uwo"] = jnp.zeros((H, OUT_PAD), jnp.float32).at[:, :3].set(
        p["uwo"]).astype(cd)
    q["ubo"] = jnp.zeros((1, OUT_PAD), jnp.float32).at[:, :3].set(p["ubo"])
    # F_net (fw0 pre-split: t row stays f32/elementwise, u rows zero-padded to
    # 128 so they contract the lane-dense u_pad directly)
    q["fw0_t"] = p["fw0"][0:1, :].astype(jnp.float32)         # (1,H)
    q["fw0_u"] = jnp.zeros((OUT_PAD, H), jnp.float32).at[:3, :].set(
        p["fw0"][1:4, :]).astype(cd)                          # (128,H)
    q["fb0"] = p["fb0"].astype(jnp.float32)
    q["fwh"] = p["fwh"].astype(cd)
    q["fbh"] = p["fbh"].astype(jnp.float32)
    q["fwo"] = jnp.zeros((H, OUT_PAD), jnp.float32).at[:, :2].set(
        p["fwo"]).astype(cd)
    q["fbo"] = jnp.zeros((1, OUT_PAD), jnp.float32).at[:, :2].set(p["fbo"])
    return q


def pinn_forward(t, p, *, compute_dtype=jnp.bfloat16, batch_tile=512):
    B = t.shape[0]
    q = prepare_params(p, compute_dtype)

    # ------------- U_net: one full-batch call (BN needs the whole batch) -----
    u_args = (t, q["uw0"], q["ub0"], q["uwh"], q["ubh"], q["ug"], q["ube"],
              q["uwo"], q["ubo"])
    u_cost = pl.CostEstimate(
        flops=2 * B * H * H * N_LAYERS + 2 * B * H * OUT_PAD,
        transcendentals=B * H * (N_LAYERS + 1) + N_LAYERS * H,
        bytes_accessed=_bytes(*u_args) + B * OUT_PAD * 4)
    u_pad = pl.pallas_call(
        functools.partial(u_net_kernel, compute_dtype=compute_dtype),
        out_shape=jax.ShapeDtypeStruct((B, OUT_PAD), jnp.float32),
        grid=(1,),
        in_specs=[_full_spec(a) for a in u_args],
        out_specs=pl.BlockSpec((B, OUT_PAD), lambda i: (0, 0)),
        compiler_params=pltpu.CompilerParams(
            dimension_semantics=("arbitrary",),
            vmem_limit_bytes=VMEM_LIMIT),
        cost_estimate=u_cost,
    )(*u_args)
    u = u_pad[:, :3]

    # ------------- F_net: batch-tiled, parallel grid axis --------------------
    tb = min(batch_tile, _round_up(B, 8))
    Bp = _round_up(B, tb)
    if Bp != B:
        # Padded rows compute garbage and are sliced off; F_net is row-wise.
        t_p = jnp.pad(t, ((0, Bp - B), (0, 0)))
        u_pad_p = jnp.pad(u_pad, ((0, Bp - B), (0, 0)))
    else:
        t_p, u_pad_p = t, u_pad

    f_w = (q["fw0_t"], q["fw0_u"], q["fb0"], q["fwh"], q["fbh"],
           q["fwo"], q["fbo"])
    f_cost = pl.CostEstimate(
        flops=2 * Bp * H * (OUT_PAD + N_LAYERS * H + OUT_PAD),
        transcendentals=Bp * H * (N_LAYERS + 1),
        bytes_accessed=_bytes(t_p, u_pad_p, *f_w) + Bp * OUT_PAD * 4)
    in_specs = ([pl.BlockSpec((tb, 1), lambda i: (i, 0)),
                 pl.BlockSpec((tb, OUT_PAD), lambda i: (i, 0))]
                + [_full_spec(a) for a in f_w])
    f_pad = pl.pallas_call(
        functools.partial(f_net_kernel, compute_dtype=compute_dtype),
        out_shape=jax.ShapeDtypeStruct((Bp, OUT_PAD), jnp.float32),
        grid=(Bp // tb,),
        in_specs=in_specs,
        out_specs=pl.BlockSpec((tb, OUT_PAD), lambda i: (i, 0)),
        compiler_params=pltpu.CompilerParams(
            dimension_semantics=("parallel",),
            vmem_limit_bytes=VMEM_LIMIT),
        cost_estimate=f_cost,
    )(t_p, u_pad_p, *f_w)
    f = f_pad[:B, :2]
    return u, f


# -----------------------------------------------------------------------------
# Parameter init (PyTorch nn.Linear default init, BN weight=1 / bias=0)
# -----------------------------------------------------------------------------
def init_params(key):
    ks = jax.random.split(key, 12)

    def lin(k, fan_in, fan_out):
        lim = 1.0 / jnp.sqrt(jnp.float32(fan_in))
        kw, kb = jax.random.split(k)
        w = jax.random.uniform(kw, (fan_in, fan_out), jnp.float32, -lim, lim)
        b = jax.random.uniform(kb, (1, fan_out), jnp.float32, -lim, lim)
        return w, b

    p = {}
    # U_net
    p["uw0"], p["ub0"] = lin(ks[0], 1, H)
    uwh, ubh = [], []
    for i in range(N_LAYERS):
        w, b = lin(ks[1 + i], H, H)
        uwh.append(w)
        ubh.append(b)
    p["uwh"] = jnp.stack(uwh)                          # (3, H, H)
    p["ubh"] = jnp.stack(ubh)                          # (3, 1, H)
    p["ug"] = jnp.ones((N_LAYERS, 1, H), jnp.float32)   # BN weight init = 1
    p["ube"] = jnp.zeros((N_LAYERS, 1, H), jnp.float32)  # BN bias init = 0
    p["uwo"], p["ubo"] = lin(ks[4], H, 3)
    # F_net
    p["fw0"], p["fb0"] = lin(ks[5], 4, H)
    fwh, fbh = [], []
    for i in range(N_LAYERS):
        w, b = lin(ks[6 + i], H, H)
        fwh.append(w)
        fbh.append(b)
    p["fwh"] = jnp.stack(fwh)
    p["fbh"] = jnp.stack(fbh)
    p["fwo"], p["fbo"] = lin(ks[9], H, 2)
    # TODO(synk): scalar Parameters a=1.0, b=-1.0 and BN running_mean/var
    # updates are training-side state unused by this pure forward pass.
    return p


# -----------------------------------------------------------------------------
# Pure-JAX reference (same contraction dtype as the kernel for validation)
# -----------------------------------------------------------------------------
def pinn_reference(t, p, compute_dtype=jnp.float32):
    cd = compute_dtype

    def mm(x, w):
        return jnp.dot(x.astype(cd), w.astype(cd),
                       preferred_element_type=jnp.float32)

    h = jnp.tanh(t * p["uw0"] + p["ub0"])
    for i in range(N_LAYERS):
        z = mm(h, p["uwh"][i]) + p["ubh"][i]
        mu = z.mean(axis=0, keepdims=True)
        var = ((z - mu) ** 2).mean(axis=0, keepdims=True)
        h = jnp.tanh((z - mu) / jnp.sqrt(var + EPS) * p["ug"][i] + p["ube"][i])
    u = mm(h, p["uwo"]) + p["ubo"]
    # cat([t, u]) @ fw0 written as the equivalent split
    g = jnp.tanh(t * p["fw0"][0:1, :] + mm(u, p["fw0"][1:4, :]) + p["fb0"])
    for i in range(N_LAYERS):
        g = jnp.tanh(mm(g, p["fwh"][i]) + p["fbh"][i])
    f = mm(g, p["fwo"]) + p["fbo"]
    return u, f


if __name__ == "__main__":
    key = jax.random.PRNGKey(0)
    kp, kt = jax.random.split(key)
    params = init_params(kp)

    B = 8
    t = jax.random.uniform(kt, (B, 1), jnp.float32)   # time inputs, shape (B, 1)

    # f32 MXU path: faithful to the PyTorch module semantics.
    u_f32, f_f32 = pinn_forward(t, params, compute_dtype=jnp.float32)
    jax.block_until_ready((u_f32, f_f32))
    u_ref, f_ref = pinn_reference(t, params, compute_dtype=jnp.float32)
    assert u_f32.shape == (B, 3) and f_f32.shape == (B, 2)
    assert jnp.allclose(u_f32, u_ref, rtol=1e-3, atol=1e-4)
    assert jnp.allclose(f_f32, f_ref, rtol=1e-3, atol=1e-4)

    # bf16 MXU path (perf mode for v6e/v7x): validated against a reference that
    # uses the identical bf16-operand / f32-accumulate contraction.
    u_bf, f_bf = pinn_forward(t, params, compute_dtype=jnp.bfloat16)
    jax.block_until_ready((u_bf, f_bf))
    u_ref_bf, f_ref_bf = pinn_reference(t, params, compute_dtype=jnp.bfloat16)
    assert u_bf.shape == (B, 3) and f_bf.shape == (B, 2)
    assert jnp.allclose(u_bf, u_ref_bf, rtol=1e-2, atol=1e-3)
    assert jnp.allclose(f_bf, f_ref_bf, rtol=1e-2, atol=1e-3)

    print("KERNEL_OK")
</pallas_src>

<mosaic_0001>
module attributes {stable_mosaic.version = 11 : i64} {
  func.func @u_net_kernel(%arg0: i32, %arg1: memref<8x1xf32, #tpu.memory_space<vmem>>, %arg2: memref<1x128xf32, #tpu.memory_space<vmem>>, %arg3: memref<1x128xf32, #tpu.memory_space<vmem>>, %arg4: memref<3x128x128xf32, #tpu.memory_space<vmem>>, %arg5: memref<3x1x128xf32, #tpu.memory_space<vmem>>, %arg6: memref<3x1x128xf32, #tpu.memory_space<vmem>>, %arg7: memref<3x1x128xf32, #tpu.memory_space<vmem>>, %arg8: memref<128x128xf32, #tpu.memory_space<vmem>>, %arg9: memref<1x128xf32, #tpu.memory_space<vmem>>, %arg10: memref<8x128xf32, #tpu.memory_space<vmem>>) attributes {dimension_semantics = [#tpu.dimension_semantics<arbitrary>], iteration_bounds = array<i64: 1>, scalar_prefetch = 0 : i64, scratch_operands = 0 : i64, tpu.core_type = #tpu.core_type<tc>, window_params = [{pipeline_mode = #tpu.pipeline_mode<synchronous>, transform_indices = @transform_0, window_bounds = array<i64: 8, 1>}, {pipeline_mode = #tpu.pipeline_mode<synchronous>, transform_indices = @transform_1, window_bounds = array<i64: 1, 128>}, {pipeline_mode = #tpu.pipeline_mode<synchronous>, transform_indices = @transform_2, window_bounds = array<i64: 1, 128>}, {pipeline_mode = #tpu.pipeline_mode<synchronous>, transform_indices = @transform_3, window_bounds = array<i64: 3, 128, 128>}, {pipeline_mode = #tpu.pipeline_mode<synchronous>, transform_indices = @transform_4, window_bounds = array<i64: 3, 1, 128>}, {pipeline_mode = #tpu.pipeline_mode<synchronous>, transform_indices = @transform_5, window_bounds = array<i64: 3, 1, 128>}, {pipeline_mode = #tpu.pipeline_mode<synchronous>, transform_indices = @transform_6, window_bounds = array<i64: 3, 1, 128>}, {pipeline_mode = #tpu.pipeline_mode<synchronous>, transform_indices = @transform_7, window_bounds = array<i64: 128, 128>}, {pipeline_mode = #tpu.pipeline_mode<synchronous>, transform_indices = @transform_8, window_bounds = array<i64: 1, 128>}, {pipeline_mode = #tpu.pipeline_mode<synchronous>, transform_indices = @transform_9, window_bounds = array<i64: 8, 128>}]} {
    %c0 = arith.constant 0 : index
    %c0_0 = arith.constant 0 : index
    %0 = vector.load %arg1[%c0, %c0_0] : memref<8x1xf32, #tpu.memory_space<vmem>>, vector<8x1xf32>
    %c0_1 = arith.constant 0 : index
    %c0_2 = arith.constant 0 : index
    %1 = vector.load %arg2[%c0_1, %c0_2] : memref<1x128xf32, #tpu.memory_space<vmem>>, vector<1x128xf32>
    %2 = vector.broadcast %0 : vector<8x1xf32> to vector<8x128xf32>
    %3 = vector.broadcast %1 : vector<1x128xf32> to vector<8x128xf32>
    %4 = arith.mulf %2, %3 : vector<8x128xf32>
    %c0_3 = arith.constant 0 : index
    %c0_4 = arith.constant 0 : index
    %5 = vector.load %arg3[%c0_3, %c0_4] : memref<1x128xf32, #tpu.memory_space<vmem>>, vector<1x128xf32>
    %6 = vector.broadcast %5 : vector<1x128xf32> to vector<8x128xf32>
    %7 = arith.addf %4, %6 : vector<8x128xf32>
    %8 = math.tanh %7 : vector<8x128xf32>
    %c0_5 = arith.constant 0 : index
    %c0_6 = arith.constant 0 : index
    %c0_7 = arith.constant 0 : index
    %9 = vector.load %arg4[%c0_5, %c0_6, %c0_7] : memref<3x128x128xf32, #tpu.memory_space<vmem>>, vector<1x128x128xf32>
    %10 = vector.shape_cast %9 : vector<1x128x128xf32> to vector<128x128xf32>
    %cst = arith.constant dense<0.000000e+00> : vector<8x128xf32>
    %11 = tpu.matmul %8, %10, %cst {dimension_numbers = #tpu.dot_dimension_numbers<[1], [0], [0], [1], [0, 0, 1, 1], [], []>} : vector<8x128xf32>, vector<128x128xf32>, vector<8x128xf32> -> vector<8x128xf32>
    %c0_8 = arith.constant 0 : index
    %c0_9 = arith.constant 0 : index
    %c0_10 = arith.constant 0 : index
    %12 = vector.load %arg5[%c0_8, %c0_9, %c0_10] : memref<3x1x128xf32, #tpu.memory_space<vmem>>, vector<1x1x128xf32>
    %13 = vector.shape_cast %12 : vector<1x1x128xf32> to vector<1x128xf32>
    %14 = vector.broadcast %13 : vector<1x128xf32> to vector<8x128xf32>
    %15 = arith.addf %11, %14 : vector<8x128xf32>
    %cst_11 = arith.constant dense<0.000000e+00> : vector<128xf32>
    %16 = vector.multi_reduction <add>, %15, %cst_11 [0] : vector<8x128xf32> to vector<128xf32>
    %17 = vector.shape_cast %16 : vector<128xf32> to vector<1x128xf32>
    %cst_12 = arith.constant 8.000000e+00 : f32
    %18 = vector.broadcast %cst_12 : f32 to vector<1x128xf32>
    %19 = arith.divf %17, %18 : vector<1x128xf32>
    %20 = vector.broadcast %19 : vector<1x128xf32> to vector<8x128xf32>
    %21 = arith.subf %15, %20 : vector<8x128xf32>
    %22 = vector.broadcast %19 : vector<1x128xf32> to vector<8x128xf32>
    %23 = arith.subf %15, %22 : vector<8x128xf32>
    %24 = arith.mulf %21, %23 : vector<8x128xf32>
    %cst_13 = arith.constant dense<0.000000e+00> : vector<128xf32>
    %25 = vector.multi_reduction <add>, %24, %cst_13 [0] : vector<8x128xf32> to vector<128xf32>
    %26 = vector.shape_cast %25 : vector<128xf32> to vector<1x128xf32>
    %cst_14 = arith.constant 8.000000e+00 : f32
    %27 = vector.broadcast %cst_14 : f32 to vector<1x128xf32>
    %28 = arith.divf %26, %27 : vector<1x128xf32>
    %c0_15 = arith.constant 0 : index
    %c0_16 = arith.constant 0 : index
    %c0_17 = arith.constant 0 : index
    %29 = vector.load %arg6[%c0_15, %c0_16, %c0_17] : memref<3x1x128xf32, #tpu.memory_space<vmem>>, vector<1x1x128xf32>
    %30 = vector.shape_cast %29 : vector<1x1x128xf32> to vector<1x128xf32>
    %cst_18 = arith.constant 9.99999974E-6 : f32
    %31 = vector.broadcast %cst_18 : f32 to vector<1x128xf32>
    %32 = arith.addf %28, %31 : vector<1x128xf32>
    %33 = math.rsqrt %32 : vector<1x128xf32>
    %34 = arith.mulf %30, %33 : vector<1x128xf32>
    %35 = vector.broadcast %19 : vector<1x128xf32> to vector<8x128xf32>
    %36 = arith.subf %15, %35 : vector<8x128xf32>
    %37 = vector.broadcast %34 : vector<1x128xf32> to vector<8x128xf32>
    %38 = arith.mulf %36, %37 : vector<8x128xf32>
    %c0_19 = arith.constant 0 : index
    %c0_20 = arith.constant 0 : index
    %c0_21 = arith.constant 0 : index
    %39 = vector.load %arg7[%c0_19, %c0_20, %c0_21] : memref<3x1x128xf32, #tpu.memory_space<vmem>>, vector<1x1x128xf32>
    %40 = vector.shape_cast %39 : vector<1x1x128xf32> to vector<1x128xf32>
    %41 = vector.broadcast %40 : vector<1x128xf32> to vector<8x128xf32>
    %42 = arith.addf %38, %41 : vector<8x128xf32>
    %43 = math.tanh %42 : vector<8x128xf32>
    %c1 = arith.constant 1 : index
    %c0_22 = arith.constant 0 : index
    %c0_23 = arith.constant 0 : index
    %44 = vector.load %arg4[%c1, %c0_22, %c0_23] : memref<3x128x128xf32, #tpu.memory_space<vmem>>, vector<1x128x128xf32>
    %45 = vector.shape_cast %44 : vector<1x128x128xf32> to vector<128x128xf32>
    %cst_24 = arith.constant dense<0.000000e+00> : vector<8x128xf32>
    %46 = tpu.matmul %43, %45, %cst_24 {dimension_numbers = #tpu.dot_dimension_numbers<[1], [0], [0], [1], [0, 0, 1, 1], [], []>} : vector<8x128xf32>, vector<128x128xf32>, vector<8x128xf32> -> vector<8x128xf32>
    %c1_25 = arith.constant 1 : index
    %c0_26 = arith.constant 0 : index
    %c0_27 = arith.constant 0 : index
    %47 = vector.load %arg5[%c1_25, %c0_26, %c0_27] : memref<3x1x128xf32, #tpu.memory_space<vmem>>, vector<1x1x128xf32>
    %48 = vector.shape_cast %47 : vector<1x1x128xf32> to vector<1x128xf32>
    %49 = vector.broadcast %48 : vector<1x128xf32> to vector<8x128xf32>
    %50 = arith.addf %46, %49 : vector<8x128xf32>
    %cst_28 = arith.constant dense<0.000000e+00> : vector<128xf32>
    %51 = vector.multi_reduction <add>, %50, %cst_28 [0] : vector<8x128xf32> to vector<128xf32>
    %52 = vector.shape_cast %51 : vector<128xf32> to vector<1x128xf32>
    %cst_29 = arith.constant 8.000000e+00 : f32
    %53 = vector.broadcast %cst_29 : f32 to vector<1x128xf32>
    %54 = arith.divf %52, %53 : vector<1x128xf32>
    %55 = vector.broadcast %54 : vector<1x128xf32> to vector<8x128xf32>
    %56 = arith.subf %50, %55 : vector<8x128xf32>
    %57 = vector.broadcast %54 : vector<1x128xf32> to vector<8x128xf32>
    %58 = arith.subf %50, %57 : vector<8x128xf32>
    %59 = arith.mulf %56, %58 : vector<8x128xf32>
    %cst_30 = arith.constant dense<0.000000e+00> : vector<128xf32>
    %60 = vector.multi_reduction <add>, %59, %cst_30 [0] : vector<8x128xf32> to vector<128xf32>
    %61 = vector.shape_cast %60 : vector<128xf32> to vector<1x128xf32>
    %cst_31 = arith.constant 8.000000e+00 : f32
    %62 = vector.broadcast %cst_31 : f32 to vector<1x128xf32>
    %63 = arith.divf %61, %62 : vector<1x128xf32>
    %c1_32 = arith.constant 1 : index
    %c0_33 = arith.constant 0 : index
    %c0_34 = arith.constant 0 : index
    %64 = vector.load %arg6[%c1_32, %c0_33, %c0_34] : memref<3x1x128xf32, #tpu.memory_space<vmem>>, vector<1x1x128xf32>
    %65 = vector.shape_cast %64 : vector<1x1x128xf32> to vector<1x128xf32>
    %cst_35 = arith.constant 9.99999974E-6 : f32
    %66 = vector.broadcast %cst_35 : f32 to vector<1x128xf32>
    %67 = arith.addf %63, %66 : vector<1x128xf32>
    %68 = math.rsqrt %67 : vector<1x128xf32>
    %69 = arith.mulf %65, %68 : vector<1x128xf32>
    %70 = vector.broadcast %54 : vector<1x128xf32> to vector<8x128xf32>
    %71 = arith.subf %50, %70 : vector<8x128xf32>
    %72 = vector.broadcast %69 : vector<1x128xf32> to vector<8x128xf32>
    %73 = arith.mulf %71, %72 : vector<8x128xf32>
    %c1_36 = arith.constant 1 : index
    %c0_37 = arith.constant 0 : index
    %c0_38 = arith.constant 0 : index
    %74 = vector.load %arg7[%c1_36, %c0_37, %c0_38] : memref<3x1x128xf32, #tpu.memory_space<vmem>>, vector<1x1x128xf32>
    %75 = vector.shape_cast %74 : vector<1x1x128xf32> to vector<1x128xf32>
    %76 = vector.broadcast %75 : vector<1x128xf32> to vector<8x128xf32>
    %77 = arith.addf %73, %76 : vector<8x128xf32>
    %78 = math.tanh %77 : vector<8x128xf32>
    %c2 = arith.constant 2 : index
    %c0_39 = arith.constant 0 : index
    %c0_40 = arith.constant 0 : index
    %79 = vector.load %arg4[%c2, %c0_39, %c0_40] : memref<3x128x128xf32, #tpu.memory_space<vmem>>, vector<1x128x128xf32>
    %80 = vector.shape_cast %79 : vector<1x128x128xf32> to vector<128x128xf32>
    %cst_41 = arith.constant dense<0.000000e+00> : vector<8x128xf32>
    %81 = tpu.matmul %78, %80, %cst_41 {dimension_numbers = #tpu.dot_dimension_numbers<[1], [0], [0], [1], [0, 0, 1, 1], [], []>} : vector<8x128xf32>, vector<128x128xf32>, vector<8x128xf32> -> vector<8x128xf32>
    %c2_42 = arith.constant 2 : index
    %c0_43 = arith.constant 0 : index
    %c0_44 = arith.constant 0 : index
    %82 = vector.load %arg5[%c2_42, %c0_43, %c0_44] : memref<3x1x128xf32, #tpu.memory_space<vmem>>, vector<1x1x128xf32>
    %83 = vector.shape_cast %82 : vector<1x1x128xf32> to vector<1x128xf32>
    %84 = vector.broadcast %83 : vector<1x128xf32> to vector<8x128xf32>
    %85 = arith.addf %81, %84 : vector<8x128xf32>
    %cst_45 = arith.constant dense<0.000000e+00> : vector<128xf32>
    %86 = vector.multi_reduction <add>, %85, %cst_45 [0] : vector<8x128xf32> to vector<128xf32>
    %87 = vector.shape_cast %86 : vector<128xf32> to vector<1x128xf32>
    %cst_46 = arith.constant 8.000000e+00 : f32
    %88 = vector.broadcast %cst_46 : f32 to vector<1x128xf32>
    %89 = arith.divf %87, %88 : vector<1x128xf32>
    %90 = vector.broadcast %89 : vector<1x128xf32> to vector<8x128xf32>
    %91 = arith.subf %85, %90 : vector<8x128xf32>
    %92 = vector.broadcast %89 : vector<1x128xf32> to vector<8x128xf32>
    %93 = arith.subf %85, %92 : vector<8x128xf32>
    %94 = arith.mulf %91, %93 : vector<8x128xf32>
    %cst_47 = arith.constant dense<0.000000e+00> : vector<128xf32>
    %95 = vector.multi_reduction <add>, %94, %cst_47 [0] : vector<8x128xf32> to vector<128xf32>
    %96 = vector.shape_cast %95 : vector<128xf32> to vector<1x128xf32>
    %cst_48 = arith.constant 8.000000e+00 : f32
    %97 = vector.broadcast %cst_48 : f32 to vector<1x128xf32>
    %98 = arith.divf %96, %97 : vector<1x128xf32>
    %c2_49 = arith.constant 2 : index
    %c0_50 = arith.constant 0 : index
    %c0_51 = arith.constant 0 : index
    %99 = vector.load %arg6[%c2_49, %c0_50, %c0_51] : memref<3x1x128xf32, #tpu.memory_space<vmem>>, vector<1x1x128xf32>
    %100 = vector.shape_cast %99 : vector<1x1x128xf32> to vector<1x128xf32>
    %cst_52 = arith.constant 9.99999974E-6 : f32
    %101 = vector.broadcast %cst_52 : f32 to vector<1x128xf32>
    %102 = arith.addf %98, %101 : vector<1x128xf32>
    %103 = math.rsqrt %102 : vector<1x128xf32>
    %104 = arith.mulf %100, %103 : vector<1x128xf32>
    %105 = vector.broadcast %89 : vector<1x128xf32> to vector<8x128xf32>
    %106 = arith.subf %85, %105 : vector<8x128xf32>
    %107 = vector.broadcast %104 : vector<1x128xf32> to vector<8x128xf32>
    %108 = arith.mulf %106, %107 : vector<8x128xf32>
    %c2_53 = arith.constant 2 : index
    %c0_54 = arith.constant 0 : index
    %c0_55 = arith.constant 0 : index
    %109 = vector.load %arg7[%c2_53, %c0_54, %c0_55] : memref<3x1x128xf32, #tpu.memory_space<vmem>>, vector<1x1x128xf32>
    %110 = vector.shape_cast %109 : vector<1x1x128xf32> to vector<1x128xf32>
    %111 = vector.broadcast %110 : vector<1x128xf32> to vector<8x128xf32>
    %112 = arith.addf %108, %111 : vector<8x128xf32>
    %113 = math.tanh %112 : vector<8x128xf32>
    %c0_56 = arith.constant 0 : index
    %c0_57 = arith.constant 0 : index
    %114 = vector.load %arg8[%c0_56, %c0_57] : memref<128x128xf32, #tpu.memory_space<vmem>>, vector<128x128xf32>
    %cst_58 = arith.constant dense<0.000000e+00> : vector<8x128xf32>
    %115 = tpu.matmul %113, %114, %cst_58 {dimension_numbers = #tpu.dot_dimension_numbers<[1], [0], [0], [1], [0, 0, 1, 1], [], []>} : vector<8x128xf32>, vector<128x128xf32>, vector<8x128xf32> -> vector<8x128xf32>
    %c0_59 = arith.constant 0 : index
    %c0_60 = arith.constant 0 : index
    %116 = vector.load %arg9[%c0_59, %c0_60] : memref<1x128xf32, #tpu.memory_space<vmem>>, vector<1x128xf32>
    %117 = vector.broadcast %116 : vector<1x128xf32> to vector<8x128xf32>
    %118 = arith.addf %115, %117 : vector<8x128xf32>
    %c0_61 = arith.constant 0 : index
    %c0_62 = arith.constant 0 : index
    %119 = vector.load %arg10[%c0_61, %c0_62] : memref<8x128xf32, #tpu.memory_space<vmem>>, vector<8x128xf32>
    tpu.vector_store %arg10[%c0_61, %c0_62], %118 {strides = array<i32>} : memref<8x128xf32, #tpu.memory_space<vmem>>, vector<8x128xf32>,
    return
  }
  func.func @transform_0(%arg0: i32) -> (i32, i32) {
    %c0_i32 = arith.constant 0 : i32
    %c0_i32_0 = arith.constant 0 : i32
    %c0_i32_1 = arith.constant 0 : i32
    return %c0_i32, %c0_i32_0 : i32, i32
  }
  func.func @transform_1(%arg0: i32) -> (i32, i32) {
    %c0_i32 = arith.constant 0 : i32
    %c0_i32_0 = arith.constant 0 : i32
    %c0_i32_1 = arith.constant 0 : i32
    return %c0_i32, %c0_i32_0 : i32, i32
  }
  func.func @transform_2(%arg0: i32) -> (i32, i32) {
    %c0_i32 = arith.constant 0 : i32
    %c0_i32_0 = arith.constant 0 : i32
    %c0_i32_1 = arith.constant 0 : i32
    return %c0_i32, %c0_i32_0 : i32, i32
  }
  func.func @transform_3(%arg0: i32) -> (i32, i32, i32) {
    %c0_i32 = arith.constant 0 : i32
    %c0_i32_0 = arith.constant 0 : i32
    %c0_i32_1 = arith.constant 0 : i32
    %c0_i32_2 = arith.constant 0 : i32
    return %c0_i32, %c0_i32_0, %c0_i32_1 : i32, i32, i32
  }
  func.func @transform_4(%arg0: i32) -> (i32, i32, i32) {
    %c0_i32 = arith.constant 0 : i32
    %c0_i32_0 = arith.constant 0 : i32
    %c0_i32_1 = arith.constant 0 : i32
    %c0_i32_2 = arith.constant 0 : i32
    return %c0_i32, %c0_i32_0, %c0_i32_1 : i32, i32, i32
  }
  func.func @transform_5(%arg0: i32) -> (i32, i32, i32) {
    %c0_i32 = arith.constant 0 : i32
    %c0_i32_0 = arith.constant 0 : i32
    %c0_i32_1 = arith.constant 0 : i32
    %c0_i32_2 = arith.constant 0 : i32
    return %c0_i32, %c0_i32_0, %c0_i32_1 : i32, i32, i32
  }
  func.func @transform_6(%arg0: i32) -> (i32, i32, i32) {
    %c0_i32 = arith.constant 0 : i32
    %c0_i32_0 = arith.constant 0 : i32
    %c0_i32_1 = arith.constant 0 : i32
    %c0_i32_2 = arith.constant 0 : i32
    return %c0_i32, %c0_i32_0, %c0_i32_1 : i32, i32, i32
  }
  func.func @transform_7(%arg0: i32) -> (i32, i32) {
    %c0_i32 = arith.constant 0 : i32
    %c0_i32_0 = arith.constant 0 : i32
    %c0_i32_1 = arith.constant 0 : i32
    return %c0_i32, %c0_i32_0 : i32, i32
  }
  func.func @transform_8(%arg0: i32) -> (i32, i32) {
    %c0_i32 = arith.constant 0 : i32
    %c0_i32_0 = arith.constant 0 : i32
    %c0_i32_1 = arith.constant 0 : i32
    return %c0_i32, %c0_i32_0 : i32, i32
  }
  func.func @transform_9(%arg0: i32) -> (i32, i32) {
    %c0_i32 = arith.constant 0 : i32
    %c0_i32_0 = arith.constant 0 : i32
    %c0_i32_1 = arith.constant 0 : i32
    return %c0_i32, %c0_i32_0 : i32, i32
  }
}

</mosaic_0001>

<llo_original>
// kernel: tpu_custom_call.1
$region0: #{tpu_custom_call.1}
  #allocation0 [shape = 'u32[]', space=smem, size = 0x4, offset = 0x4, fixed_abs, tag = 'smem constant byte address 0x4 - core index']
  #allocation1 [shape = 'u32[144,128]{1,0:T(1,128)}', space=vmem, size = 0x12000, scoped, tag = 'internal scratch']
  %s0 = inlined_call_operand.vmem [shape: f32[8,1], index: 0, kind: input, shape index: {}]
  %s1 = inlined_call_operand.vmem [shape: f32[1,128], index: 1, kind: input, shape index: {}]
  %s2 = inlined_call_operand.vmem [shape: f32[1,128], index: 2, kind: input, shape index: {}]
  %s3 = inlined_call_operand.hbm [shape: f32[3,128,128], index: 3, kind: input, shape index: {}]
  %s4 = inlined_call_operand.vmem [shape: f32[3,1,128], index: 4, kind: input, shape index: {}]
  %s5 = inlined_call_operand.vmem [shape: f32[3,1,128], index: 5, kind: input, shape index: {}]
  %s6 = inlined_call_operand.vmem [shape: f32[3,1,128], index: 6, kind: input, shape index: {}]
  %s7 = inlined_call_operand.hbm [shape: f32[128,128], index: 7, kind: input, shape index: {}]
  %s8 = inlined_call_operand.vmem [shape: f32[1,128], index: 8, kind: input, shape index: {}]
  %s9 = inlined_call_operand.hbm [shape: f32[8,128], index: 9, kind: output, shape index: {}]
  %s10 = sld [smem:[#allocation0]]
  $region54: #{tpu_custom_call.1} parent=0
    _
  %s12 = ssub.s32 1, %s10
  %s13 = scalar_select 0, %s12, %s10
  $region1: #{tpu_custom_call.1} parent=0
    #allocation2 [shape = 'u8[196608]{0}', space=vmem, size = 0x30000, scoped, tag = 'input window, operand 3, single buffered']
    #allocation3 [shape = 's32[1]{0}', space=sflag, size = 0x4, scoped, tag = 'scoped memory for tpu_custom_call.1']
    #allocation4 [shape = 's32[1]{0}', space=sflag, size = 0x4, scoped, tag = 'scoped memory for tpu_custom_call.1']
    #allocation5 [shape = 'u8[65536]{0}', space=vmem, size = 0x10000, scoped, tag = 'input window, operand 7, single buffered']
    #allocation6 [shape = 's32[1]{0}', space=sflag, size = 0x4, scoped, tag = 'scoped memory for tpu_custom_call.1']
    #allocation7 [shape = 'u8[4096]{0}', space=vmem, size = 0x1000, scoped, tag = 'output window, operand 0, single buffered']
    %14 = vsyncpa [#allocation3], 0
    %15 = vsyncpa [#allocation6], 0
    %16 = vsyncpa [#allocation4], 0
    // Predicated region
    $region2: #{tpu_custom_call.1} parent=1 // pred_check
      _
    $region3: #{tpu_custom_call.1} parent=1 // pred_check_branch
      %18 = sbr.rel (0) target = $region5
    $region4: #{tpu_custom_call.1} parent=1 // pred_region
      _
    $region5: #{tpu_custom_call.1} parent=1 // pred_fallthru
      _
    // Predicated region
    $region6: #{tpu_custom_call.1} parent=1 // pred_check
      _
    $region7: #{tpu_custom_call.1} parent=1 // pred_check_branch
      %20 = sbr.rel (0) target = $region9
    $region8: #{tpu_custom_call.1} parent=1 // pred_region
      _
    $region9: #{tpu_custom_call.1} parent=1 // pred_fallthru
      _
    // Predicated region
    $region10: #{tpu_custom_call.1} parent=1 // pred_check
      _
    $region11: #{tpu_custom_call.1} parent=1 // pred_check_branch
      %22 = sbr.rel (0) target = $region13
    $region12: #{tpu_custom_call.1} parent=1 // pred_region
      _
    $region13: #{tpu_custom_call.1} parent=1 // pred_fallthru
      _
    // Predicated region
    $region14: #{tpu_custom_call.1} parent=1 // pred_check
      _
    $region15: #{tpu_custom_call.1} parent=1 // pred_check_branch
      %24 = sbr.rel (0) target = $region17
    $region16: #{tpu_custom_call.1} parent=1 // pred_region
      %s26 = ssub.s32 6144, 6144
      %27 = vsyncadd [#allocation3], %s26
      %s28 = sshll.u32 [#allocation2], 4
      %s29 = int_to_ptr.vmem [resolvable:$true] %s28
      %34 = dma.hbm_to_vmem [thread:$0]  %s3, 6144, %s29, [#allocation3], 128, 128, 8
    $region17: #{tpu_custom_call.1} parent=1 // pred_fallthru
      _
    // Predicated region
    $region18: #{tpu_custom_call.1} parent=1 // pred_check
      _
    $region19: #{tpu_custom_call.1} parent=1 // pred_check_branch
      %36 = sbr.rel (0) target = $region21
    $region20: #{tpu_custom_call.1} parent=1 // pred_region
      _
    $region21: #{tpu_custom_call.1} parent=1 // pred_fallthru
      _
    // Predicated region
    $region22: #{tpu_custom_call.1} parent=1 // pred_check
      _
    $region23: #{tpu_custom_call.1} parent=1 // pred_check_branch
      %38 = sbr.rel (0) target = $region25
    $region24: #{tpu_custom_call.1} parent=1 // pred_region
      _
    $region25: #{tpu_custom_call.1} parent=1 // pred_fallthru
      _
    // Predicated region
    $region26: #{tpu_custom_call.1} parent=1 // pred_check
      _
    $region27: #{tpu_custom_call.1} parent=1 // pred_check_branch
      %40 = sbr.rel (0) target = $region29
    $region28: #{tpu_custom_call.1} parent=1 // pred_region
      _
    $region29: #{tpu_custom_call.1} parent=1 // pred_fallthru
      _
    // Predicated region
    $region30: #{tpu_custom_call.1} parent=1 // pred_check
      _
    $region31: #{tpu_custom_call.1} parent=1 // pred_check_branch
      %42 = sbr.rel (0) target = $region33
    $region32: #{tpu_custom_call.1} parent=1 // pred_region
      %s44 = ssub.s32 2048, 2048
      %45 = vsyncadd [#allocation6], %s44
      %s46 = sshll.u32 [#allocation5], 4
      %s47 = int_to_ptr.vmem [resolvable:$true] %s46
      %52 = dma.hbm_to_vmem [thread:$0]  %s7, 2048, %s47, [#allocation6], 128, 128, 8
    $region33: #{tpu_custom_call.1} parent=1 // pred_fallthru
      _
    // Predicated region
    $region34: #{tpu_custom_call.1} parent=1 // pred_check
      _
    $region35: #{tpu_custom_call.1} parent=1 // pred_check_branch
      %54 = sbr.rel (0) target = $region37
    $region36: #{tpu_custom_call.1} parent=1 // pred_region
      _
    $region37: #{tpu_custom_call.1} parent=1 // pred_fallthru
      _
    // Predicated region
    $region38: #{tpu_custom_call.1} parent=1 // pred_check
      _
    $region39: #{tpu_custom_call.1} parent=1 // pred_check_branch
      %56 = sbr.rel (0) target = $region41
    $region40: #{tpu_custom_call.1} parent=1 // pred_region
      %57 = dma.done [#allocation3], 6144
    $region41: #{tpu_custom_call.1} parent=1 // pred_fallthru
      _
    // Predicated region
    $region42: #{tpu_custom_call.1} parent=1 // pred_check
      _
    $region43: #{tpu_custom_call.1} parent=1 // pred_check_branch
      %59 = sbr.rel (0) target = $region45
    $region44: #{tpu_custom_call.1} parent=1 // pred_region
      %60 = dma.done [#allocation6], 2048
    $region45: #{tpu_custom_call.1} parent=1 // pred_fallthru
      _
    %v61 = vld [vmem:[%s0] sm:$0xff]
    %v62 = vld [vmem:[%s1] sm:$0x1]
    %64 = vset.pattern.permute.xlu0 0
    %65 = vperm.xlu0 %64, %v61
    %v66 = vpop.permute.xlu0 %65
    %v69 = vlaneseq
    %v70 = vshrl.u32 %v69, 7
    %v71 = vsub.s32 0, %v70
    %v72 = vrot.slane %v62, %v71
    %v74 = vmul.f32 %v66, %v72
    %v75 = vld [vmem:[%s2] sm:$0x1]
    %v77 = vlaneseq
    %v78 = vshrl.u32 %v77, 7
    %v79 = vsub.s32 0, %v78
    %v80 = vrot.slane %v75, %v79
    %v82 = vadd.f32 %v74, %v80
    %v83 = vtanh.pop %v82
    %v84 = vld [vmem:[#allocation2] sm:$0xff]
    %v85 = vld [vmem:[#allocation2 + $0x8] sm:$0xff]
    %v86 = vld [vmem:[#allocation2 + $0x10] sm:$0xff]
    %v87 = vld [vmem:[#allocation2 + $0x18] sm:$0xff]
    %v88 = vld [vmem:[#allocation2 + $0x20] sm:$0xff]
    %v89 = vld [vmem:[#allocation2 + $0x28] sm:$0xff]
    %v90 = vld [vmem:[#allocation2 + $0x30] sm:$0xff]
    %v91 = vld [vmem:[#allocation2 + $0x38] sm:$0xff]
    %v92 = vld [vmem:[#allocation2 + $0x40] sm:$0xff]
    %v93 = vld [vmem:[#allocation2 + $0x48] sm:$0xff]
    %v94 = vld [vmem:[#allocation2 + $0x50] sm:$0xff]
    %v95 = vld [vmem:[#allocation2 + $0x58] sm:$0xff]
    %v96 = vld [vmem:[#allocation2 + $0x60] sm:$0xff]
    %v97 = vld [vmem:[#allocation2 + $0x68] sm:$0xff]
    %v98 = vld [vmem:[#allocation2 + $0x70] sm:$0xff]
    %v99 = vld [vmem:[#allocation2 + $0x78] sm:$0xff]
    %v100 = vld [vmem:[%s4] sm:$0x1]
    %v102 = vlaneseq
    %v103 = vshrl.u32 %v102, 7
    %v104 = vsub.s32 0, %v103
    %v105 = vrot.slane %v100, %v104
    %107 = vmatprep.subr.mxu0 0.0
    %108 = vmatpush1.msra.mxu0 %v84
    %109 = vmatprep.subr.mxu0 0.0
    %110 = vmatpush1.msra.mxu0 %v85
    %111 = vmatprep.subr.mxu0 0.0
    %112 = vmatpush1.msra.mxu0 %v86
    %113 = vmatprep.subr.mxu0 0.0
    %114 = vmatpush1.msra.mxu0 %v87
    %115 = vmatprep.subr.mxu0 0.0
    %116 = vmatpush1.msra.mxu0 %v88
    %117 = vmatprep.subr.mxu0 0.0
    %118 = vmatpush1.msra.mxu0 %v89
    %119 = vmatprep.subr.mxu0 0.0
    %120 = vmatpush1.msra.mxu0 %v90
    %121 = vmatprep.subr.mxu0 0.0
    %122 = vmatpush1.msra.mxu0 %v91
    %123 = vmatprep.subr.mxu0 0.0
    %124 = vmatpush1.msra.mxu0 %v92
    %125 = vmatprep.subr.mxu0 0.0
    %126 = vmatpush1.msra.mxu0 %v93
    %127 = vmatprep.subr.mxu0 0.0
    %128 = vmatpush1.msra.mxu0 %v94
    %129 = vmatprep.subr.mxu0 0.0
    %130 = vmatpush1.msra.mxu0 %v95
    %131 = vmatprep.subr.mxu0 0.0
    %132 = vmatpush1.msra.mxu0 %v96
    %133 = vmatprep.subr.mxu0 0.0
    %134 = vmatpush1.msra.mxu0 %v97
    %135 = vmatprep.subr.mxu0 0.0
    %136 = vmatpush1.msra.mxu0 %v98
    %137 = vmatprep.subr.mxu0 0.0
    %138 = vmatpush1.msra.mxu0 %v99
    %139 = vmatprep.subr.mxu0 0.0
    %140 = vmatpush1.msra.mxu0 0.0
    %141 = vmatprep.subr.mxu0 0.0
    %142 = vmatpush1.msra.mxu0 0.0
    %143 = vmatprep.subr.mxu0 0.0
    %144 = vmatpush1.msra.mxu0 0.0
    %145 = vmatprep.subr.mxu0 0.0
    %146 = vmatpush1.msra.mxu0 0.0
    %147 = vmatprep.subr.mxu0 0.0
    %148 = vmatpush1.msra.mxu0 0.0
    %149 = vmatprep.subr.mxu0 0.0
    %150 = vmatpush1.msra.mxu0 0.0
    %151 = vmatprep.subr.mxu0 0.0
    %152 = vmatpush1.msra.mxu0 0.0
    %153 = vmatprep.subr.mxu0 0.0
    %154 = vmatpush1.msra.mxu0 0.0
    %155 = vmatprep.subr.mxu0 0.0
    %156 = vmatpush1.msra.mxu0 0.0
    %157 = vmatprep.subr.mxu0 0.0
    %158 = vmatpush1.msra.mxu0 0.0
    %159 = vmatprep.subr.mxu0 0.0
    %160 = vmatpush1.msra.mxu0 0.0
    %161 = vmatprep.subr.mxu0 0.0
    %162 = vmatpush1.msra.mxu0 0.0
    %163 = vmatprep.subr.mxu0 0.0
    %164 = vmatpush1.msra.mxu0 0.0
    %165 = vmatprep.subr.mxu0 0.0
    %166 = vmatpush1.msra.mxu0 0.0
    %167 = vmatprep.subr.mxu0 0.0
    %168 = vmatpush1.msra.mxu0 0.0
    %169 = vmatprep.subr.mxu0 0.0
    %170 = vmatpush1.msra.mxu0 0.0
    %171 = vmatprep.mubr.f32.mxu0 0.0
    %172 = vmatmul.mubr.f32.gmra.mrb[0].mxu0 %v83
    %v173 = vpop.f32.mrb[0].mxu0
    %v174 = vadd.f32 %v105, %v173
    %v175 = vpop.f32.mrb[0].mxu0
    %176 = vdwg.mxu0
    %v177 = vrot.slane %v174, 4
    %v178 = vadd.f32 %v174, %v177
    %v179 = vrot.slane %v178, 2
    %v180 = vadd.f32 %v178, %v179
    %v181 = vrot.slane %v180, 1
    %v182 = vadd.f32 %v180, %v181
    %v183 = vrcp.pop 8.0
    %v184 = vmul.f32 %v182, %v183
    %v185 = vsub.f32 %v174, %v184
    %v186 = vmul.f32 %v185, %v185
    %v187 = vrot.slane %v186, 4
    %v188 = vadd.f32 %v186, %v187
    %v189 = vrot.slane %v188, 2
    %v190 = vadd.f32 %v188, %v189
    %v191 = vrot.slane %v190, 1
    %v192 = vadd.f32 %v190, %v191
    %v193 = vmul.f32 %v192, %v183
    %v194 = vld [vmem:[%s5] sm:$0x1]
    %v195 = vadd.f32 %v193, 1e-05
    %v196 = vrsqrt.pop %v195
    %v197 = vmul.f32 %v194, %v196
    %v199 = vlaneseq
    %v200 = vshrl.u32 %v199, 7
    %v201 = vsub.s32 0, %v200
    %v202 = vrot.slane %v197, %v201
    %v204 = vmul.f32 %v185, %v202
    %v205 = vld [vmem:[%s6] sm:$0x1]
    %v207 = vlaneseq
    %v208 = vshrl.u32 %v207, 7
    %v209 = vsub.s32 0, %v208
    %v210 = vrot.slane %v205, %v209
    %v212 = vadd.f32 %v204, %v210
    %v213 = vtanh.pop %v212
    %s214 = scalar_lea.vmem [#allocation2], 128
    %v215 = vld [vmem:[%s214] sm:$0xff]
    %v216 = vld [vmem:[%s214 + $0x8] sm:$0xff]
    %v217 = vld [vmem:[%s214 + $0x10] sm:$0xff]
    %v218 = vld [vmem:[%s214 + $0x18] sm:$0xff]
    %v219 = vld [vmem:[%s214 + $0x20] sm:$0xff]
    %v220 = vld [vmem:[%s214 + $0x28] sm:$0xff]
    %v221 = vld [vmem:[%s214 + $0x30] sm:$0xff]
    %v222 = vld [vmem:[%s214 + $0x38] sm:$0xff]
    %v223 = vld [vmem:[%s214 + $0x40] sm:$0xff]
    %v224 = vld [vmem:[%s214 + $0x48] sm:$0xff]
    %v225 = vld [vmem:[%s214 + $0x50] sm:$0xff]
    %v226 = vld [vmem:[%s214 + $0x58] sm:$0xff]
    %v227 = vld [vmem:[%s214 + $0x60] sm:$0xff]
    %v228 = vld [vmem:[%s214 + $0x68] sm:$0xff]
    %v229 = vld [vmem:[%s214 + $0x70] sm:$0xff]
    %v230 = vld [vmem:[%s214 + $0x78] sm:$0xff]
    %s231 = scalar_lea.vmem %s4, 1
    %v232 = vld [vmem:[%s231] sm:$0x1]
    %v234 = vlaneseq
    %v235 = vshrl.u32 %v234, 7
    %v236 = vsub.s32 0, %v235
    %v237 = vrot.slane %v232, %v236
    %239 = vmatprep.subr.mxu0 0.0
    %240 = vmatpush1.msra.mxu0 %v215
    %241 = vmatprep.subr.mxu0 0.0
    %242 = vmatpush1.msra.mxu0 %v216
    %243 = vmatprep.subr.mxu0 0.0
    %244 = vmatpush1.msra.mxu0 %v217
    %245 = vmatprep.subr.mxu0 0.0
    %246 = vmatpush1.msra.mxu0 %v218
    %247 = vmatprep.subr.mxu0 0.0
    %248 = vmatpush1.msra.mxu0 %v219
    %249 = vmatprep.subr.mxu0 0.0
    %250 = vmatpush1.msra.mxu0 %v220
    %251 = vmatprep.subr.mxu0 0.0
    %252 = vmatpush1.msra.mxu0 %v221
    %253 = vmatprep.subr.mxu0 0.0
    %254 = vmatpush1.msra.mxu0 %v222
    %255 = vmatprep.subr.mxu0 0.0
    %256 = vmatpush1.msra.mxu0 %v223
    %257 = vmatprep.subr.mxu0 0.0
    %258 = vmatpush1.msra.mxu0 %v224
    %259 = vmatprep.subr.mxu0 0.0
    %260 = vmatpush1.msra.mxu0 %v225
    %261 = vmatprep.subr.mxu0 0.0
    %262 = vmatpush1.msra.mxu0 %v226
    %263 = vmatprep.subr.mxu0 0.0
    %264 = vmatpush1.msra.mxu0 %v227
    %265 = vmatprep.subr.mxu0 0.0
    %266 = vmatpush1.msra.mxu0 %v228
    %267 = vmatprep.subr.mxu0 0.0
    %268 = vmatpush1.msra.mxu0 %v229
    %269 = vmatprep.subr.mxu0 0.0
    %270 = vmatpush1.msra.mxu0 %v230
    %271 = vmatprep.subr.mxu0 0.0
    %272 = vmatpush1.msra.mxu0 0.0
    %273 = vmatprep.subr.mxu0 0.0
    %274 = vmatpush1.msra.mxu0 0.0
    %275 = vmatprep.subr.mxu0 0.0
    %276 = vmatpush1.msra.mxu0 0.0
    %277 = vmatprep.subr.mxu0 0.0
    %278 = vmatpush1.msra.mxu0 0.0
    %279 = vmatprep.subr.mxu0 0.0
    %280 = vmatpush1.msra.mxu0 0.0
    %281 = vmatprep.subr.mxu0 0.0
    %282 = vmatpush1.msra.mxu0 0.0
    %283 = vmatprep.subr.mxu0 0.0
    %284 = vmatpush1.msra.mxu0 0.0
    %285 = vmatprep.subr.mxu0 0.0
    %286 = vmatpush1.msra.mxu0 0.0
    %287 = vmatprep.subr.mxu0 0.0
    %288 = vmatpush1.msra.mxu0 0.0
    %289 = vmatprep.subr.mxu0 0.0
    %290 = vmatpush1.msra.mxu0 0.0
    %291 = vmatprep.subr.mxu0 0.0
    %292 = vmatpush1.msra.mxu0 0.0
    %293 = vmatprep.subr.mxu0 0.0
    %294 = vmatpush1.msra.mxu0 0.0
    %295 = vmatprep.subr.mxu0 0.0
    %296 = vmatpush1.msra.mxu0 0.0
    %297 = vmatprep.subr.mxu0 0.0
    %298 = vmatpush1.msra.mxu0 0.0
    %299 = vmatprep.subr.mxu0 0.0
    %300 = vmatpush1.msra.mxu0 0.0
    %301 = vmatprep.subr.mxu0 0.0
    %302 = vmatpush1.msra.mxu0 0.0
    %303 = vmatprep.mubr.f32.mxu0 0.0
    %304 = vmatmul.mubr.f32.gmra.mrb[0].mxu0 %v213
    %v305 = vpop.f32.mrb[0].mxu0
    %v306 = vadd.f32 %v237, %v305
    %v307 = vpop.f32.mrb[0].mxu0
    %308 = vdwg.mxu0
    %v309 = vrot.slane %v306, 4
    %v310 = vadd.f32 %v306, %v309
    %v311 = vrot.slane %v310, 2
    %v312 = vadd.f32 %v310, %v311
    %v313 = vrot.slane %v312, 1
    %v314 = vadd.f32 %v312, %v313
    %v315 = vmul.f32 %v314, %v183
    %v316 = vsub.f32 %v306, %v315
    %v317 = vmul.f32 %v316, %v316
    %v318 = vrot.slane %v317, 4
    %v319 = vadd.f32 %v317, %v318
    %v320 = vrot.slane %v319, 2
    %v321 = vadd.f32 %v319, %v320
    %v322 = vrot.slane %v321, 1
    %v323 = vadd.f32 %v321, %v322
    %v324 = vmul.f32 %v323, %v183
    %s325 = scalar_lea.vmem %s5, 1
    %v326 = vld [vmem:[%s325] sm:$0x1]
    %v327 = vadd.f32 %v324, 1e-05
    %v328 = vrsqrt.pop %v327
    %v329 = vmul.f32 %v326, %v328
    %v331 = vlaneseq
    %v332 = vshrl.u32 %v331, 7
    %v333 = vsub.s32 0, %v332
    %v334 = vrot.slane %v329, %v333
    %v336 = vmul.f32 %v316, %v334
    %s337 = scalar_lea.vmem %s6, 1
    %v338 = vld [vmem:[%s337] sm:$0x1]
    %v340 = vlaneseq
    %v341 = vshrl.u32 %v340, 7
    %v342 = vsub.s32 0, %v341
    %v343 = vrot.slane %v338, %v342
    %v345 = vadd.f32 %v336, %v343
    %v346 = vtanh.pop %v345
    %s347 = scalar_lea.vmem [#allocation2], 256
    %v348 = vld [vmem:[%s347] sm:$0xff]
    %v349 = vld [vmem:[%s347 + $0x8] sm:$0xff]
    %v350 = vld [vmem:[%s347 + $0x10] sm:$0xff]
    %v351 = vld [vmem:[%s347 + $0x18] sm:$0xff]
    %v352 = vld [vmem:[%s347 + $0x20] sm:$0xff]
    %v353 = vld [vmem:[%s347 + $0x28] sm:$0xff]
    %v354 = vld [vmem:[%s347 + $0x30] sm:$0xff]
    %v355 = vld [vmem:[%s347 + $0x38] sm:$0xff]
    %v356 = vld [vmem:[%s347 + $0x40] sm:$0xff]
    %v357 = vld [vmem:[%s347 + $0x48] sm:$0xff]
    %v358 = vld [vmem:[%s347 + $0x50] sm:$0xff]
    %v359 = vld [vmem:[%s347 + $0x58] sm:$0xff]
    %v360 = vld [vmem:[%s347 + $0x60] sm:$0xff]
    %v361 = vld [vmem:[%s347 + $0x68] sm:$0xff]
    %v362 = vld [vmem:[%s347 + $0x70] sm:$0xff]
    %v363 = vld [vmem:[%s347 + $0x78] sm:$0xff]
    %s364 = scalar_lea.vmem %s4, 2
    %v365 = vld [vmem:[%s364] sm:$0x1]
    %v367 = vlaneseq
    %v368 = vshrl.u32 %v367, 7
    %v369 = vsub.s32 0, %v368
    %v370 = vrot.slane %v365, %v369
    %372 = vmatprep.subr.mxu0 0.0
    %373 = vmatpush1.msra.mxu0 %v348
    %374 = vmatprep.subr.mxu0 0.0
    %375 = vmatpush1.msra.mxu0 %v349
    %376 = vmatprep.subr.mxu0 0.0
    %377 = vmatpush1.msra.mxu0 %v350
    %378 = vmatprep.subr.mxu0 0.0
    %379 = vmatpush1.msra.mxu0 %v351
    %380 = vmatprep.subr.mxu0 0.0
    %381 = vmatpush1.msra.mxu0 %v352
    %382 = vmatprep.subr.mxu0 0.0
    %383 = vmatpush1.msra.mxu0 %v353
    %384 = vmatprep.subr.mxu0 0.0
    %385 = vmatpush1.msra.mxu0 %v354
    %386 = vmatprep.subr.mxu0 0.0
    %387 = vmatpush1.msra.mxu0 %v355
    %388 = vmatprep.subr.mxu0 0.0
    %389 = vmatpush1.msra.mxu0 %v356
    %390 = vmatprep.subr.mxu0 0.0
    %391 = vmatpush1.msra.mxu0 %v357
    %392 = vmatprep.subr.mxu0 0.0
    %393 = vmatpush1.msra.mxu0 %v358
    %394 = vmatprep.subr.mxu0 0.0
    %395 = vmatpush1.msra.mxu0 %v359
    %396 = vmatprep.subr.mxu0 0.0
    %397 = vmatpush1.msra.mxu0 %v360
    %398 = vmatprep.subr.mxu0 0.0
    %399 = vmatpush1.msra.mxu0 %v361
    %400 = vmatprep.subr.mxu0 0.0
    %401 = vmatpush1.msra.mxu0 %v362
    %402 = vmatprep.subr.mxu0 0.0
    %403 = vmatpush1.msra.mxu0 %v363
    %404 = vmatprep.subr.mxu0 0.0
    %405 = vmatpush1.msra.mxu0 0.0
    %406 = vmatprep.subr.mxu0 0.0
    %407 = vmatpush1.msra.mxu0 0.0
    %408 = vmatprep.subr.mxu0 0.0
    %409 = vmatpush1.msra.mxu0 0.0
    %410 = vmatprep.subr.mxu0 0.0
    %411 = vmatpush1.msra.mxu0 0.0
    %412 = vmatprep.subr.mxu0 0.0
    %413 = vmatpush1.msra.mxu0 0.0
    %414 = vmatprep.subr.mxu0 0.0
    %415 = vmatpush1.msra.mxu0 0.0
    %416 = vmatprep.subr.mxu0 0.0
    %417 = vmatpush1.msra.mxu0 0.0
    %418 = vmatprep.subr.mxu0 0.0
    %419 = vmatpush1.msra.mxu0 0.0
    %420 = vmatprep.subr.mxu0 0.0
    %421 = vmatpush1.msra.mxu0 0.0
    %422 = vmatprep.subr.mxu0 0.0
    %423 = vmatpush1.msra.mxu0 0.0
    %424 = vmatprep.subr.mxu0 0.0
    %425 = vmatpush1.msra.mxu0 0.0
    %426 = vmatprep.subr.mxu0 0.0
    %427 = vmatpush1.msra.mxu0 0.0
    %428 = vmatprep.subr.mxu0 0.0
    %429 = vmatpush1.msra.mxu0 0.0
    %430 = vmatprep.subr.mxu0 0.0
    %431 = vmatpush1.msra.mxu0 0.0
    %432 = vmatprep.subr.mxu0 0.0
    %433 = vmatpush1.msra.mxu0 0.0
    %434 = vmatprep.subr.mxu0 0.0
    %435 = vmatpush1.msra.mxu0 0.0
    %436 = vmatprep.mubr.f32.mxu0 0.0
    %437 = vmatmul.mubr.f32.gmra.mrb[0].mxu0 %v346
    %v438 = vpop.f32.mrb[0].mxu0
    %v439 = vadd.f32 %v370, %v438
    %v440 = vpop.f32.mrb[0].mxu0
    %441 = vdwg.mxu0
    %v442 = vrot.slane %v439, 4
    %v443 = vadd.f32 %v439, %v442
    %v444 = vrot.slane %v443, 2
    %v445 = vadd.f32 %v443, %v444
    %v446 = vrot.slane %v445, 1
    %v447 = vadd.f32 %v445, %v446
    %v448 = vmul.f32 %v447, %v183
    %v449 = vsub.f32 %v439, %v448
    %v450 = vmul.f32 %v449, %v449
    %v451 = vrot.slane %v450, 4
    %v452 = vadd.f32 %v450, %v451
    %v453 = vrot.slane %v452, 2
    %v454 = vadd.f32 %v452, %v453
    %v455 = vrot.slane %v454, 1
    %v456 = vadd.f32 %v454, %v455
    %v457 = vmul.f32 %v456, %v183
    %s458 = scalar_lea.vmem %s5, 2
    %v459 = vld [vmem:[%s458] sm:$0x1]
    %v460 = vadd.f32 %v457, 1e-05
    %v461 = vrsqrt.pop %v460
    %v462 = vmul.f32 %v459, %v461
    %v464 = vlaneseq
    %v465 = vshrl.u32 %v464, 7
    %v466 = vsub.s32 0, %v465
    %v467 = vrot.slane %v462, %v466
    %v469 = vmul.f32 %v449, %v467
    %s470 = scalar_lea.vmem %s6, 2
    %v471 = vld [vmem:[%s470] sm:$0x1]
    %v473 = vlaneseq
    %v474 = vshrl.u32 %v473, 7
    %v475 = vsub.s32 0, %v474
    %v476 = vrot.slane %v471, %v475
    %v478 = vadd.f32 %v469, %v476
    %v479 = vtanh.pop %v478
    %v480 = vld [vmem:[#allocation5] sm:$0xff]
    %v481 = vld [vmem:[#allocation5 + $0x8] sm:$0xff]
    %v482 = vld [vmem:[#allocation5 + $0x10] sm:$0xff]
    %v483 = vld [vmem:[#allocation5 + $0x18] sm:$0xff]
    %v484 = vld [vmem:[#allocation5 + $0x20] sm:$0xff]
    %v485 = vld [vmem:[#allocation5 + $0x28] sm:$0xff]
    %v486 = vld [vmem:[#allocation5 + $0x30] sm:$0xff]
    %v487 = vld [vmem:[#allocation5 + $0x38] sm:$0xff]
    %v488 = vld [vmem:[#allocation5 + $0x40] sm:$0xff]
    %v489 = vld [vmem:[#allocation5 + $0x48] sm:$0xff]
    %v490 = vld [vmem:[#allocation5 + $0x50] sm:$0xff]
    %v491 = vld [vmem:[#allocation5 + $0x58] sm:$0xff]
    %v492 = vld [vmem:[#allocation5 + $0x60] sm:$0xff]
    %v493 = vld [vmem:[#allocation5 + $0x68] sm:$0xff]
    %v494 = vld [vmem:[#allocation5 + $0x70] sm:$0xff]
    %v495 = vld [vmem:[#allocation5 + $0x78] sm:$0xff]
    %v496 = vld [vmem:[%s8] sm:$0x1]
    %v498 = vlaneseq
    %v499 = vshrl.u32 %v498, 7
    %v500 = vsub.s32 0, %v499
    %v501 = vrot.slane %v496, %v500
    %503 = vmatprep.subr.mxu0 0.0
    %504 = vmatpush1.msra.mxu0 %v480
    %505 = vmatprep.subr.mxu0 0.0
    %506 = vmatpush1.msra.mxu0 %v481
    %507 = vmatprep.subr.mxu0 0.0
    %508 = vmatpush1.msra.mxu0 %v482
    %509 = vmatprep.subr.mxu0 0.0
    %510 = vmatpush1.msra.mxu0 %v483
    %511 = vmatprep.subr.mxu0 0.0
    %512 = vmatpush1.msra.mxu0 %v484
    %513 = vmatprep.subr.mxu0 0.0
    %514 = vmatpush1.msra.mxu0 %v485
    %515 = vmatprep.subr.mxu0 0.0
    %516 = vmatpush1.msra.mxu0 %v486
    %517 = vmatprep.subr.mxu0 0.0
    %518 = vmatpush1.msra.mxu0 %v487
    %519 = vmatprep.subr.mxu0 0.0
    %520 = vmatpush1.msra.mxu0 %v488
    %521 = vmatprep.subr.mxu0 0.0
    %522 = vmatpush1.msra.mxu0 %v489
    %523 = vmatprep.subr.mxu0 0.0
    %524 = vmatpush1.msra.mxu0 %v490
    %525 = vmatprep.subr.mxu0 0.0
    %526 = vmatpush1.msra.mxu0 %v491
    %527 = vmatprep.subr.mxu0 0.0
    %528 = vmatpush1.msra.mxu0 %v492
    %529 = vmatprep.subr.mxu0 0.0
    %530 = vmatpush1.msra.mxu0 %v493
    %531 = vmatprep.subr.mxu0 0.0
    %532 = vmatpush1.msra.mxu0 %v494
    %533 = vmatprep.subr.mxu0 0.0
    %534 = vmatpush1.msra.mxu0 %v495
    %535 = vmatprep.subr.mxu0 0.0
    %536 = vmatpush1.msra.mxu0 0.0
    %537 = vmatprep.subr.mxu0 0.0
    %538 = vmatpush1.msra.mxu0 0.0
    %539 = vmatprep.subr.mxu0 0.0
    %540 = vmatpush1.msra.mxu0 0.0
    %541 = vmatprep.subr.mxu0 0.0
    %542 = vmatpush1.msra.mxu0 0.0
    %543 = vmatprep.subr.mxu0 0.0
    %544 = vmatpush1.msra.mxu0 0.0
    %545 = vmatprep.subr.mxu0 0.0
    %546 = vmatpush1.msra.mxu0 0.0
    %547 = vmatprep.subr.mxu0 0.0
    %548 = vmatpush1.msra.mxu0 0.0
    %549 = vmatprep.subr.mxu0 0.0
    %550 = vmatpush1.msra.mxu0 0.0
    %551 = vmatprep.subr.mxu0 0.0
    %552 = vmatpush1.msra.mxu0 0.0
    %553 = vmatprep.subr.mxu0 0.0
    %554 = vmatpush1.msra.mxu0 0.0
    %555 = vmatprep.subr.mxu0 0.0
    %556 = vmatpush1.msra.mxu0 0.0
    %557 = vmatprep.subr.mxu0 0.0
    %558 = vmatpush1.msra.mxu0 0.0
    %559 = vmatprep.subr.mxu0 0.0
    %560 = vmatpush1.msra.mxu0 0.0
    %561 = vmatprep.subr.mxu0 0.0
    %562 = vmatpush1.msra.mxu0 0.0
    %563 = vmatprep.subr.mxu0 0.0
    %564 = vmatpush1.msra.mxu0 0.0
    %565 = vmatprep.subr.mxu0 0.0
    %566 = vmatpush1.msra.mxu0 0.0
    %567 = vmatprep.mubr.f32.mxu0 0.0
    %568 = vmatmul.mubr.f32.gmra.mrb[0].mxu0 %v479
    %v569 = vpop.f32.mrb[0].mxu0
    %v570 = vadd.f32 %v501, %v569
    %v571 = vpop.f32.mrb[0].mxu0
    %572 = vdwg.mxu0
    %573 = vst [vmem:[#allocation7] sm:$0xff] %v570
    // Predicated region
    $region46: #{tpu_custom_call.1} parent=1 // pred_check
      _
    $region47: #{tpu_custom_call.1} parent=1 // pred_check_branch
      %575 = sbr.rel (0) target = $region49
    $region48: #{tpu_custom_call.1} parent=1 // pred_region
      %s577 = ssub.s32 128, 128
      %578 = vsyncadd [#allocation4], %s577
      %s580 = sshll.u32 [#allocation7], 4
      %s581 = int_to_ptr.vmem [resolvable:$true] %s580
      %583 = dma.vmem_to_hbm [thread:$0]  %s581, 128, %s9, [#allocation4]
    $region49: #{tpu_custom_call.1} parent=1 // pred_fallthru
      _
    // Predicated region
    $region50: #{tpu_custom_call.1} parent=1 // pred_check
      _
    $region51: #{tpu_custom_call.1} parent=1 // pred_check_branch
      %585 = sbr.rel (0) target = $region53
    $region52: #{tpu_custom_call.1} parent=1 // pred_region
      %586 = dma.done [#allocation4], 128
    $region53: #{tpu_custom_call.1} parent=1 // pred_fallthru
      _
    %587 = vsyncpa [#allocation3], 1
    %588 = vsyncpa [#allocation6], 1
    %589 = vsyncpa [#allocation4], 1

</llo_original>
